<compile_context>
chip_gen: v5e
topology: v5e:2x2
jax: 0.10.0
libtpu: 0.0.40
codegen_flags: <defaults>
</compile_context>

<pallas_src>
import functools

import jax
import jax.numpy as jnp
from jax import lax
from jax.experimental import pallas as pl
from jax.experimental.pallas import tpu as pltpu


def layernorm1d_kernel(x_ref, gamma_ref, beta_ref, y_ref, *, inv_d, eps):
    x = x_ref[...]                                            # (B, tile_d) f32

    # Per-column stats over the batch axis; divide by the FULL feature dim D
    # (reference quirk), baked in as the static Python float inv_d.
    mean = jnp.sum(x, axis=0, keepdims=True) * inv_d          # (1, tile_d)
    var = jnp.sum((x - mean) ** 2, axis=0, keepdims=True) * inv_d

    # Reference precedence quirk: z = x - (mean / sqrt(var + eps)).
    # rsqrt goes to the EUP (its own VLIW slot) instead of a VPU divide.
    shift = mean * lax.rsqrt(var + eps)                       # (1, tile_d)

    # y = (x - shift) * gamma + beta  ==  x * gamma + (beta - shift * gamma)
    gamma = gamma_ref[...]                                    # (1, tile_d)
    offset = beta_ref[...] - shift * gamma                    # (1, tile_d)
    y_ref[...] = x * gamma + offset


def _vmem_budget_bytes():
    """Per-generation VMEM budget (leave headroom for compiler scratch)."""
    try:
        cap = pltpu.get_tpu_info().vmem_capacity_bytes
    except Exception:
        cap = 64 * 1024 * 1024   # conservative fallback (v7x-sized)
    return int(cap * 3 // 4)


def _choose_tile_d(B, D, vmem_budget_bytes, target_block_bytes=4 * 1024 * 1024):
    """Largest lane-dense tile (multiple of 128) dividing D such that the
    double-buffered x/y blocks fit the VMEM budget and each block is roughly
    `target_block_bytes` (long DMA runs, few grid steps). Keeps >= 2 grid
    steps when D allows so v7x megacore can shard the 'parallel' axis."""
    if D % 128 != 0:
        # Not lane-dense: fall back to a single full-D block (correct; only
        # relevant for toy shapes like D=32).
        return D

    bytes_per_col = B * 4                                     # one f32 column
    # 2x double-buffered x blocks + 2x double-buffered y blocks.
    max_cols_vmem = max(vmem_budget_bytes // (4 * bytes_per_col), 1)
    target_cols = max(target_block_bytes // bytes_per_col, 128)
    limit = min(max_cols_vmem, target_cols, D)
    if D >= 256:
        limit = min(limit, D // 2)    # keep >= 2 grid steps for megacore

    best = None
    t = 128
    while t <= limit:
        if D % t == 0:
            best = t
        t += 128
    if best is None:
        best = 128    # smallest lane-dense tile (very large B); checked below
    return best


def layer_norm_1d(x, gamma, beta, *, tile_d=None):
    """x: (B, D) float32; gamma, beta: (D,) float32."""
    B, D = x.shape
    vmem_budget = _vmem_budget_bytes()
    if tile_d is None:
        tile_d = _choose_tile_d(B, D, vmem_budget)
    assert D % tile_d == 0

    # Double-buffered x + y block footprint must fit the VMEM budget.
    block_bytes = B * tile_d * 4
    if 4 * block_bytes > vmem_budget:
        # TODO(synk): add a two-pass (sum / sum-of-squares) row-tiled path for
        # very large B so columns of stats fit while rows stream through VMEM.
        raise ValueError(
            f"LayerNorm1d block ({B}, {tile_d}) f32 does not fit the VMEM "
            f"budget ({vmem_budget} bytes) even double-buffered."
        )

    gamma2 = gamma.reshape(1, D).astype(x.dtype)
    beta2 = beta.reshape(1, D).astype(x.dtype)

    kernel = functools.partial(
        layernorm1d_kernel,
        inv_d=float(1.0 / D),      # static Python floats: no captured consts
        eps=float(1e-07),
    )

    return pl.pallas_call(
        kernel,
        out_shape=jax.ShapeDtypeStruct((B, D), x.dtype),
        grid=(D // tile_d,),
        in_specs=[
            pl.BlockSpec((B, tile_d), lambda j: (0, j)),
            pl.BlockSpec((1, tile_d), lambda j: (0, j)),
            pl.BlockSpec((1, tile_d), lambda j: (0, j)),
        ],
        out_specs=pl.BlockSpec((B, tile_d), lambda j: (0, j)),
        compiler_params=pltpu.CompilerParams(
            dimension_semantics=("parallel",),
            vmem_limit_bytes=vmem_budget,
        ),
    )(x, gamma2, beta2)


def _reference(x, gamma, beta):
    """Pure-JAX transcription of the PyTorch forward (with its quirks)."""
    B, D = x.shape
    mean = x.sum(axis=0) / D
    var = ((x - mean[None, :]) ** 2).sum(axis=0) / D
    eps = jnp.float32(1e-07)
    z = x - mean[None, :] / jnp.sqrt(var + eps)[None, :]
    return z * gamma[None, :] + beta[None, :]


if __name__ == "__main__":
    key = jax.random.PRNGKey(0)

    # Case 1: small shape consistent with the module's (batch, dim) input.
    B, D = 8, 32
    x = jax.random.normal(key, (B, D), dtype=jnp.float32)
    gamma = jnp.ones((D,), dtype=jnp.float32)   # matches module __init__
    beta = jnp.zeros((D,), dtype=jnp.float32)

    y = jax.block_until_ready(layer_norm_1d(x, gamma, beta))
    y_ref = _reference(x, gamma, beta)
    assert y.shape == (B, D)
    assert jnp.allclose(y, y_ref, atol=1e-5, rtol=1e-5), "mismatch vs reference (D=32)"

    # Case 2: lane-dense feature dim exercising the D-tiled grid path
    # (auto tile sizing -> 2 grid steps of 256 lanes).
    B2, D2 = 8, 512
    key2 = jax.random.PRNGKey(0)
    x2 = jax.random.normal(key2, (B2, D2), dtype=jnp.float32)
    gamma2 = jnp.ones((D2,), dtype=jnp.float32)
    beta2 = jnp.zeros((D2,), dtype=jnp.float32)

    y2 = jax.block_until_ready(layer_norm_1d(x2, gamma2, beta2))
    y2_ref = _reference(x2, gamma2, beta2)
    assert jnp.allclose(y2, y2_ref, atol=1e-5, rtol=1e-5), "mismatch vs reference (D=512)"

    print("KERNEL_OK")
</pallas_src>

<mosaic_0001>
module attributes {stable_mosaic.version = 11 : i64} {
  func.func @layernorm1d_kernel(%arg0: i32, %arg1: memref<8x32xf32, #tpu.memory_space<vmem>>, %arg2: memref<1x32xf32, #tpu.memory_space<vmem>>, %arg3: memref<1x32xf32, #tpu.memory_space<vmem>>, %arg4: memref<8x32xf32, #tpu.memory_space<vmem>>) attributes {dimension_semantics = [#tpu.dimension_semantics<parallel>], iteration_bounds = array<i64: 1>, scalar_prefetch = 0 : i64, scratch_operands = 0 : i64, tpu.core_type = #tpu.core_type<tc>, window_params = [{transform_indices = @transform_0, window_bounds = array<i64: 8, 32>}, {transform_indices = @transform_1, window_bounds = array<i64: 1, 32>}, {transform_indices = @transform_2, window_bounds = array<i64: 1, 32>}, {transform_indices = @transform_3, window_bounds = array<i64: 8, 32>}]} {
    %c0 = arith.constant 0 : index
    %c0_0 = arith.constant 0 : index
    %0 = vector.load %arg1[%c0, %c0_0] : memref<8x32xf32, #tpu.memory_space<vmem>>, vector<8x32xf32>
    %cst = arith.constant dense<0.000000e+00> : vector<32xf32>
    %1 = vector.multi_reduction <add>, %0, %cst [0] : vector<8x32xf32> to vector<32xf32>
    %2 = vector.shape_cast %1 : vector<32xf32> to vector<1x32xf32>
    %cst_1 = arith.constant 3.125000e-02 : f32
    %3 = vector.broadcast %cst_1 : f32 to vector<1x32xf32>
    %4 = arith.mulf %2, %3 : vector<1x32xf32>
    %5 = vector.broadcast %4 : vector<1x32xf32> to vector<8x32xf32>
    %6 = arith.subf %0, %5 : vector<8x32xf32>
    %7 = arith.mulf %6, %6 : vector<8x32xf32>
    %cst_2 = arith.constant dense<0.000000e+00> : vector<32xf32>
    %8 = vector.multi_reduction <add>, %7, %cst_2 [0] : vector<8x32xf32> to vector<32xf32>
    %9 = vector.shape_cast %8 : vector<32xf32> to vector<1x32xf32>
    %cst_3 = arith.constant 3.125000e-02 : f32
    %10 = vector.broadcast %cst_3 : f32 to vector<1x32xf32>
    %11 = arith.mulf %9, %10 : vector<1x32xf32>
    %cst_4 = arith.constant 1.000000e-07 : f32
    %12 = vector.broadcast %cst_4 : f32 to vector<1x32xf32>
    %13 = arith.addf %11, %12 : vector<1x32xf32>
    %14 = math.rsqrt %13 : vector<1x32xf32>
    %15 = arith.mulf %4, %14 : vector<1x32xf32>
    %c0_5 = arith.constant 0 : index
    %c0_6 = arith.constant 0 : index
    %16 = vector.load %arg2[%c0_5, %c0_6] : memref<1x32xf32, #tpu.memory_space<vmem>>, vector<1x32xf32>
    %c0_7 = arith.constant 0 : index
    %c0_8 = arith.constant 0 : index
    %17 = vector.load %arg3[%c0_7, %c0_8] : memref<1x32xf32, #tpu.memory_space<vmem>>, vector<1x32xf32>
    %18 = arith.mulf %15, %16 : vector<1x32xf32>
    %19 = arith.subf %17, %18 : vector<1x32xf32>
    %20 = vector.broadcast %16 : vector<1x32xf32> to vector<8x32xf32>
    %21 = arith.mulf %0, %20 : vector<8x32xf32>
    %22 = vector.broadcast %19 : vector<1x32xf32> to vector<8x32xf32>
    %23 = arith.addf %21, %22 : vector<8x32xf32>
    %c0_9 = arith.constant 0 : index
    %c0_10 = arith.constant 0 : index
    %24 = vector.load %arg4[%c0_9, %c0_10] : memref<8x32xf32, #tpu.memory_space<vmem>>, vector<8x32xf32>
    tpu.vector_store %arg4[%c0_9, %c0_10], %23 {strides = array<i32>} : memref<8x32xf32, #tpu.memory_space<vmem>>, vector<8x32xf32>,
    return
  }
  func.func @transform_0(%arg0: i32) -> (i32, i32) {
    %c0_i32 = arith.constant 0 : i32
    %c0_i32_0 = arith.constant 0 : i32
    return %c0_i32, %arg0 : i32, i32
  }
  func.func @transform_1(%arg0: i32) -> (i32, i32) {
    %c0_i32 = arith.constant 0 : i32
    %c0_i32_0 = arith.constant 0 : i32
    return %c0_i32, %arg0 : i32, i32
  }
  func.func @transform_2(%arg0: i32) -> (i32, i32) {
    %c0_i32 = arith.constant 0 : i32
    %c0_i32_0 = arith.constant 0 : i32
    return %c0_i32, %arg0 : i32, i32
  }
  func.func @transform_3(%arg0: i32) -> (i32, i32) {
    %c0_i32 = arith.constant 0 : i32
    %c0_i32_0 = arith.constant 0 : i32
    return %c0_i32, %arg0 : i32, i32
  }
}

</mosaic_0001>

<llo_original>
// kernel: tpu_custom_call.1
$region0: #{tpu_custom_call.1}
  #allocation0 [shape = 'u32[]', space=smem, size = 0x4, offset = 0x4, fixed_abs, tag = 'smem constant byte address 0x4 - core index']
  #allocation1 [shape = 'u32[72,128]{1,0:T(1,128)}', space=vmem, size = 0x9000, scoped, tag = 'internal scratch']
  %s0 = inlined_call_operand.hbm [shape: f32[8,32], index: 0, kind: input, shape index: {}]
  %s1 = inlined_call_operand.hbm [shape: f32[1,32], index: 1, kind: input, shape index: {}]
  %s2 = inlined_call_operand.vmem [shape: f32[1,32], index: 2, kind: input, shape index: {}]
  %s3 = inlined_call_operand.hbm [shape: f32[8,32], index: 3, kind: output, shape index: {}]
  %s4 = sld [smem:[#allocation0]]
  $region30: #{tpu_custom_call.1} parent=0
    _
  %s6 = ssub.s32 1, %s4
  %s7 = scalar_select 0, %s6, %s4
  $region1: #{tpu_custom_call.1} parent=0
    #allocation2 [shape = 'u8[4096]{0}', space=vmem, size = 0x1000, scoped, tag = 'input window, operand 0, single buffered']
    #allocation3 [shape = 's32[1]{0}', space=sflag, size = 0x4, scoped, tag = 'scoped memory for tpu_custom_call.1']
    #allocation4 [shape = 's32[1]{0}', space=sflag, size = 0x4, scoped, tag = 'scoped memory for tpu_custom_call.1']
    #allocation5 [shape = 'u8[512]{0}', space=vmem, size = 0x400, scoped, tag = 'input window, operand 1, single buffered']
    #allocation6 [shape = 's32[1]{0}', space=sflag, size = 0x4, scoped, tag = 'scoped memory for tpu_custom_call.1']
    #allocation7 [shape = 'u8[4096]{0}', space=vmem, size = 0x1000, scoped, tag = 'output window, operand 0, single buffered']
    %8 = vsyncpa [#allocation3], 0
    %9 = vsyncpa [#allocation6], 0
    %10 = vsyncpa [#allocation4], 0
    // Predicated region
    $region2: #{tpu_custom_call.1} parent=1 // pred_check
      _
    $region3: #{tpu_custom_call.1} parent=1 // pred_check_branch
      %12 = sbr.rel (0) target = $region5
    $region4: #{tpu_custom_call.1} parent=1 // pred_region
      %14 = vsyncadd [#allocation3], 0
      %s16 = sshll.u32 %s0, 4
      %s17 = int_to_ptr.hbm [resolvable:$true] %s16
      %s18 = sshll.u32 [#allocation2], 4
      %s19 = int_to_ptr.vmem [resolvable:$true] %s18
      %21 = dma.hbm_to_vmem [thread:$0]  %s17, 128, %s19, [#allocation3]
    $region5: #{tpu_custom_call.1} parent=1 // pred_fallthru
      _
    // Predicated region
    $region6: #{tpu_custom_call.1} parent=1 // pred_check
      _
    $region7: #{tpu_custom_call.1} parent=1 // pred_check_branch
      %23 = sbr.rel (0) target = $region9
    $region8: #{tpu_custom_call.1} parent=1 // pred_region
      %25 = vsyncadd [#allocation6], 0
      %s27 = sshll.u32 %s1, 4
      %s28 = int_to_ptr.hbm [resolvable:$true] %s27
      %s29 = sshll.u32 [#allocation5], 4
      %s30 = int_to_ptr.vmem [resolvable:$true] %s29
      %32 = dma.hbm_to_vmem [thread:$0]  %s28, 16, %s30, [#allocation6]
    $region9: #{tpu_custom_call.1} parent=1 // pred_fallthru
      _
    // Predicated region
    $region10: #{tpu_custom_call.1} parent=1 // pred_check
      _
    $region11: #{tpu_custom_call.1} parent=1 // pred_check_branch
      %34 = sbr.rel (0) target = $region13
    $region12: #{tpu_custom_call.1} parent=1 // pred_region
      _
    $region13: #{tpu_custom_call.1} parent=1 // pred_fallthru
      _
    // Predicated region
    $region14: #{tpu_custom_call.1} parent=1 // pred_check
      _
    $region15: #{tpu_custom_call.1} parent=1 // pred_check_branch
      %36 = sbr.rel (0) target = $region17
    $region16: #{tpu_custom_call.1} parent=1 // pred_region
      %38 = dma.done [#allocation3], 128
    $region17: #{tpu_custom_call.1} parent=1 // pred_fallthru
      _
    // Predicated region
    $region18: #{tpu_custom_call.1} parent=1 // pred_check
      _
    $region19: #{tpu_custom_call.1} parent=1 // pred_check_branch
      %40 = sbr.rel (0) target = $region21
    $region20: #{tpu_custom_call.1} parent=1 // pred_region
      %42 = dma.done [#allocation6], 16
    $region21: #{tpu_custom_call.1} parent=1 // pred_fallthru
      _
    %v43 = vld [vmem:[#allocation2] sm:$0xff]
    %vm44 = vcmask 261120
    %v45 = vsel %vm44, %v43, 0.0
    %v46 = vrot.slane %v45, 4
    %v47 = vadd.f32 %v45, %v46
    %v48 = vrot.slane %v47, 2
    %v49 = vadd.f32 %v47, %v48
    %v50 = vrot.slane %v49, 1
    %v51 = vadd.f32 %v49, %v50
    %v52 = vmul.f32 %v51, 0.03125
    %v53 = vsub.f32 %v43, %v52
    %v54 = vmul.f32 %v53, %v53
    %v55 = vsel %vm44, %v54, 0.0
    %v56 = vrot.slane %v55, 4
    %v57 = vadd.f32 %v55, %v56
    %v58 = vrot.slane %v57, 2
    %v59 = vadd.f32 %v57, %v58
    %v60 = vrot.slane %v59, 1
    %v61 = vadd.f32 %v59, %v60
    %v62 = vmul.f32 %v61, 0.03125
    %v63 = vadd.f32 %v62, 1e-07
    %v64 = vrsqrt.pop %v63
    %v65 = vmul.f32 %v64, %v63
    %v66 = vmul.f32 %v65, %v64
    %v67 = vmul.f32 0.5, %v66
    %v68 = vsub.f32 1.5, %v67
    %v69 = vmul.f32 %v64, %v68
    %vm70 = vweird.f32 %v63
    %vm71 = vweird.f32 %v64
    %vm72 = vmor %vm70, %vm71
    %v73 = vsel %vm72, %v64, %v69
    %v74 = vmul.f32 %v52, %v73
    %v75 = vld [vmem:[#allocation5] sm:$0x1]
    %v76 = vld [vmem:[%s2] sm:$0x1]
    %v77 = vmul.f32 %v74, %v75
    %v78 = vsub.f32 %v76, %v77
    %v80 = vperm.slane %v75, 0
    %v82 = vmul.f32 %v43, %v80
    %v84 = vperm.slane %v78, 0
    %v86 = vadd.f32 %v82, %v84
    %87 = vst.msk [vmem:[#allocation7] sm:$0xff] %vm44, %v86
    // Predicated region
    $region22: #{tpu_custom_call.1} parent=1 // pred_check
      _
    $region23: #{tpu_custom_call.1} parent=1 // pred_check_branch
      %89 = sbr.rel (0) target = $region25
    $region24: #{tpu_custom_call.1} parent=1 // pred_region
      %91 = vsyncadd [#allocation4], 0
      %s93 = sshll.u32 [#allocation7], 4
      %s94 = int_to_ptr.vmem [resolvable:$true] %s93
      %s95 = sshll.u32 %s3, 4
      %s96 = int_to_ptr.hbm [resolvable:$true] %s95
      %98 = dma.vmem_to_hbm [thread:$0]  %s94, 128, %s96, [#allocation4]
    $region25: #{tpu_custom_call.1} parent=1 // pred_fallthru
      _
    // Predicated region
    $region26: #{tpu_custom_call.1} parent=1 // pred_check
      _
    $region27: #{tpu_custom_call.1} parent=1 // pred_check_branch
      %100 = sbr.rel (0) target = $region29
    $region28: #{tpu_custom_call.1} parent=1 // pred_region
      %102 = dma.done [#allocation4], 128
    $region29: #{tpu_custom_call.1} parent=1 // pred_fallthru
      _
    %103 = vsyncpa [#allocation3], 1
    %104 = vsyncpa [#allocation6], 1
    %105 = vsyncpa [#allocation4], 1

</llo_original>
